<compile_context>
chip_gen: v7x
topology: tpu7x:2x2x1
jax: 0.10.0
libtpu: 0.0.40
codegen_flags: <defaults>
</compile_context>

<pallas_src>
import jax
import jax.numpy as jnp
from jax.experimental import pallas as pl
from jax.experimental.pallas import tpu as pltpu


def _round_up(x, m):
    return ((x + m - 1) // m) * m


def global_avg_pool2d(x, *, target_block_bytes=6 * 1024 * 1024):
    """x: (N, C, H, W) -> (N, C), mean over spatial dims (AvgPool2d(H==W) global)."""
    N, C, H, W = x.shape
    hw = H * W
    rows = N * C
    itemsize = jnp.dtype(x.dtype).itemsize

    # Rows per tile: multiple of 8 (sublane granularity), capped at 1024,
    # sized so 2 (double-buffer) x TR x HW x itemsize stays well inside the
    # scoped-VMEM default on every TPU generation (incl. v7x 64 MiB VMEM).
    tr = (target_block_bytes // max(1, hw * itemsize)) // 8 * 8
    tr = max(8, min(1024, tr))
    tr = min(tr, _round_up(rows, 8))

    rows_pad = _round_up(rows, tr)

    x2 = x.reshape(rows, hw)
    if rows_pad != rows:
        # Pad rows so the grid divides evenly (padded rows are discarded below).
        x2 = jnp.pad(x2, ((0, rows_pad - rows), (0, 0)))

    inv_hw = 1.0 / float(hw)  # true H*W divisor (NOT the tile width)

    def kernel(x_ref, o_ref):
        # Fuse the f32 upcast into the lane-axis reduction: no full f32 copy
        # of the tile is kept live, keeping vreg/VMEM pressure minimal.
        s = jnp.sum(x_ref[...], axis=-1, keepdims=True, dtype=jnp.float32)
        o_ref[...] = (s * inv_hw).astype(o_ref.dtype)

    out = pl.pallas_call(
        kernel,
        out_shape=jax.ShapeDtypeStruct((rows_pad, 1), x.dtype),
        grid=(rows_pad // tr,),
        in_specs=[pl.BlockSpec((tr, hw), lambda i: (i, 0))],
        out_specs=pl.BlockSpec((tr, 1), lambda i: (i, 0)),
        compiler_params=pltpu.CompilerParams(
            # Row tiles are independent -> shard across TCs on v7x.
            dimension_semantics=("parallel",),
            # Safe on all generations; plenty for <= ~12 MiB of double buffers.
            vmem_limit_bytes=32 * 1024 * 1024,
        ),
        cost_estimate=pl.CostEstimate(
            flops=rows * hw,
            transcendentals=0,
            bytes_accessed=rows * hw * itemsize + rows * itemsize,
        ),
    )(x2)

    return out[:rows, 0].reshape(N, C)


if __name__ == "__main__":
    key = jax.random.PRNGKey(0)

    # Small generic shape (matches previous harness).
    N, C, H, W = 2, 4, 16, 16
    x = jax.random.normal(key, (N, C, H, W), dtype=jnp.float32)
    y = global_avg_pool2d(x)
    jax.block_until_ready(y)
    y_ref = jnp.mean(x, axis=(2, 3))
    assert y.shape == (N, C), y.shape
    assert jnp.allclose(y, y_ref, atol=1e-6, rtol=1e-5), "mismatch vs reference (16x16)"

    # Actual `Net` tail shape: AvgPool2d(7) over (N, 1024, 7, 7).
    # Exercises the multi-tile row grid and a non-multiple-of-128 H*W (=49).
    N2, C2, H2, W2 = 2, 1024, 7, 7
    x2 = jax.random.normal(jax.random.PRNGKey(1), (N2, C2, H2, W2), dtype=jnp.float32)
    y2 = global_avg_pool2d(x2)
    jax.block_until_ready(y2)
    y2_ref = jnp.mean(x2, axis=(2, 3))
    assert y2.shape == (N2, C2), y2.shape
    assert jnp.allclose(y2, y2_ref, atol=1e-6, rtol=1e-5), "mismatch vs reference (7x7)"

    print("KERNEL_OK")
</pallas_src>

<mosaic_0001>
module attributes {stable_mosaic.version = 11 : i64} {
  func.func @kernel(%arg0: i32, %arg1: memref<8x256xf32, #tpu.memory_space<vmem>>, %arg2: memref<8x1xf32, #tpu.memory_space<vmem>>) attributes {dimension_semantics = [#tpu.dimension_semantics<parallel>], iteration_bounds = array<i64: 1>, scalar_prefetch = 0 : i64, scratch_operands = 0 : i64, tpu.core_type = #tpu.core_type<tc>, window_params = [{transform_indices = @transform_0, window_bounds = array<i64: 8, 256>}, {transform_indices = @transform_1, window_bounds = array<i64: 8, 1>}]} {
    %c0 = arith.constant 0 : index
    %c0_0 = arith.constant 0 : index
    %0 = vector.load %arg1[%c0, %c0_0] : memref<8x256xf32, #tpu.memory_space<vmem>>, vector<8x256xf32>
    %cst = arith.constant dense<0.000000e+00> : vector<8xf32>
    %1 = vector.multi_reduction <add>, %0, %cst [1] : vector<8x256xf32> to vector<8xf32>
    %2 = vector.shape_cast %1 : vector<8xf32> to vector<8x1xf32>
    %cst_1 = arith.constant 3.906250e-03 : f32
    %3 = vector.broadcast %cst_1 : f32 to vector<8x1xf32>
    %4 = arith.mulf %2, %3 : vector<8x1xf32>
    %c0_2 = arith.constant 0 : index
    %c0_3 = arith.constant 0 : index
    %5 = vector.load %arg2[%c0_2, %c0_3] : memref<8x1xf32, #tpu.memory_space<vmem>>, vector<8x1xf32>
    tpu.vector_store %arg2[%c0_2, %c0_3], %4 {strides = array<i32>} : memref<8x1xf32, #tpu.memory_space<vmem>>, vector<8x1xf32>,
    return
  }
  func.func @transform_0(%arg0: i32) -> (i32, i32) {
    %c0_i32 = arith.constant 0 : i32
    %c0_i32_0 = arith.constant 0 : i32
    return %arg0, %c0_i32 : i32, i32
  }
  func.func @transform_1(%arg0: i32) -> (i32, i32) {
    %c0_i32 = arith.constant 0 : i32
    %c0_i32_0 = arith.constant 0 : i32
    return %arg0, %c0_i32 : i32, i32
  }
}

</mosaic_0001>

<llo_original>
// kernel: tpu_custom_call.1
$region0: #{tpu_custom_call.1}
  #allocation0 [shape = 'u32[]', space=smem, size = 0x4, offset = 0x4, fixed_abs, tag = 'smem constant byte address 0x4 - core index']
  #allocation1 [shape = 'u32[144,128]{1,0:T(1,128)}', space=vmem, size = 0x12000, scoped, tag = 'internal scratch']
  %s0 = inlined_call_operand.hbm [shape: f32[8,256], index: 0, kind: input, shape index: {}]
  %s1 = inlined_call_operand.vmem [shape: f32[8,1], index: 1, kind: output, shape index: {}]
  %s2 = sld [smem:[#allocation0]]
  $region18: #{tpu_custom_call.1} parent=0
    _
  %s4 = ssub.s32 1, %s2
  %s5 = scalar_select 0, %s4, %s2
  $region1: #{tpu_custom_call.1} parent=0
    #allocation2 [shape = 'u8[8192]{0}', space=vmem, size = 0x2000, scoped, tag = 'input window, operand 0, single buffered']
    #allocation3 [shape = 's32[1]{0}', space=sflag, size = 0x4, scoped, tag = 'scoped memory for tpu_custom_call.1']
    %6 = vsyncpa [#allocation3], 0
    // Predicated region
    $region2: #{tpu_custom_call.1} parent=1 // pred_check
      _
    $region3: #{tpu_custom_call.1} parent=1 // pred_check_branch
      %8 = sbr.rel (0) target = $region5
    $region4: #{tpu_custom_call.1} parent=1 // pred_region
      %s10 = ssub.s32 256, 256
      %11 = vsyncadd [#allocation3], %s10
      %s13 = sshll.u32 [#allocation2], 4
      %s14 = int_to_ptr.vmem [resolvable:$true] %s13
      %16 = dma.hbm_to_vmem [thread:$0]  %s0, 256, %s14, [#allocation3]
    $region5: #{tpu_custom_call.1} parent=1 // pred_fallthru
      _
    // Predicated region
    $region6: #{tpu_custom_call.1} parent=1 // pred_check
      _
    $region7: #{tpu_custom_call.1} parent=1 // pred_check_branch
      %18 = sbr.rel (0) target = $region9
    $region8: #{tpu_custom_call.1} parent=1 // pred_region
      %19 = dma.done [#allocation3], 256
    $region9: #{tpu_custom_call.1} parent=1 // pred_fallthru
      _
    %v20 = vld [vmem:[#allocation2] sm:$0xff]
    %v21 = vld [vmem:[#allocation2 + $0x8] sm:$0xff]
    %v22 = vadd.f32 %v20, %v21
    %23 = vadd.xlane.f32.xlu0 %v22
    %v24 = vpop.xlane.xlu0 %23
    %v25 = vmul.f32 %v24, 0.00390625
    %vm26 = vcmask 7168
    %27 = vst.msk [vmem:[%s1] sm:$0xff] %vm26, %v25
    // Predicated region
    $region10: #{tpu_custom_call.1} parent=1 // pred_check
      _
    $region11: #{tpu_custom_call.1} parent=1 // pred_check_branch
      %29 = sbr.rel (0) target = $region13
    $region12: #{tpu_custom_call.1} parent=1 // pred_region
      _
    $region13: #{tpu_custom_call.1} parent=1 // pred_fallthru
      _
    // Predicated region
    $region14: #{tpu_custom_call.1} parent=1 // pred_check
      _
    $region15: #{tpu_custom_call.1} parent=1 // pred_check_branch
      %31 = sbr.rel (0) target = $region17
    $region16: #{tpu_custom_call.1} parent=1 // pred_region
      _
    $region17: #{tpu_custom_call.1} parent=1 // pred_fallthru
      _
    %32 = vsyncpa [#allocation3], 1

</llo_original>
